<compile_context>
chip_gen: v7x
topology: tpu7x:2x2x1
jax: 0.10.0
libtpu: 0.0.40
codegen_flags: <defaults>
</compile_context>

<pallas_src>
import functools

import jax
import jax.numpy as jnp
from jax.experimental import pallas as pl
from jax.experimental.pallas import tpu as pltpu


def _round_up(x: int, m: int) -> int:
    return ((x + m - 1) // m) * m


def _cdiv(a: int, b: int) -> int:
    return -(-a // b)


def _pad_to(a, shape):
    """Zero-pad array `a` up to `shape` (no-op — no HBM pass — if already there)."""
    pads = [(0, t - s) for s, t in zip(a.shape, shape)]
    if all(p == (0, 0) for p in pads):
        return a
    return jnp.pad(a, pads)


def _make_fc_kernel(num_z_layers: int):
    """Builds the fused MLP kernel for a fixed number of z-layers."""

    def kernel(*refs):
        # refs layout:
        #   x_ref (f32),
        #   w_in (bf16), b_in (f32),
        #   [w_a (bf16), w_b (bf16), b_b (f32)] * num_z_layers,
        #   w_out (bf16), b_out (f32),
        #   out_ref (bf16)
        x_ref = refs[0]
        w_in_ref, b_in_ref = refs[1], refs[2]
        idx = 3

        # x arrives in its stored dtype; cast to bf16 only at the MXU boundary.
        # All activations stay f32 for the VPU (bias add / ReLU) path.
        h = jnp.dot(x_ref[...].astype(jnp.bfloat16), w_in_ref[...],
                    preferred_element_type=jnp.float32) + b_in_ref[...]

        for _ in range(num_z_layers):
            w_a_ref, w_b_ref, b_b_ref = refs[idx], refs[idx + 1], refs[idx + 2]
            idx += 3
            z = jnp.maximum(
                jnp.dot(h.astype(jnp.bfloat16), w_a_ref[...],
                        preferred_element_type=jnp.float32),
                0.0)
            h = jnp.dot(z.astype(jnp.bfloat16), w_b_ref[...],
                        preferred_element_type=jnp.float32) + b_b_ref[...]

        w_out_ref, b_out_ref = refs[idx], refs[idx + 1]
        out_ref = refs[idx + 2]
        out_ref[...] = (jnp.dot(h.astype(jnp.bfloat16), w_out_ref[...],
                                preferred_element_type=jnp.float32)
                        + b_out_ref[...]).astype(out_ref.dtype)

    return kernel


def init_params(key, input_dim, z_wide_dim, z_narrow_dim, output_dim,
                num_z_layers):
    """Deterministic parameter init (PyTorch nn.Linear convention: W is (out, in))."""
    params = {}

    def linear(key, in_dim, out_dim, bias=True):
        kw, kb = jax.random.split(key)
        bound = 1.0 / jnp.sqrt(in_dim)
        w = jax.random.uniform(kw, (out_dim, in_dim), jnp.float32, -bound, bound)
        b = (jax.random.uniform(kb, (out_dim,), jnp.float32, -bound, bound)
             if bias else None)
        return w, b

    keys = jax.random.split(key, 2 + 2 * num_z_layers)
    params["w_in"], params["b_in"] = linear(keys[0], input_dim, z_wide_dim)
    params["z_layers"] = []
    for i in range(num_z_layers):
        w_a, _ = linear(keys[1 + 2 * i], z_wide_dim, z_narrow_dim, bias=False)
        w_b, b_b = linear(keys[2 + 2 * i], z_narrow_dim, z_wide_dim)
        params["z_layers"].append((w_a, w_b, b_b))
    params["w_out"], params["b_out"] = linear(keys[-1], z_wide_dim, output_dim)
    return params


# Largest batch tile: per-step working set at 2048 rows (f32 x tile + bf16 out
# tile, double buffered, + resident weights + f32 h/z temporaries) is ~8 MiB —
# far under the explicit 32 MiB scoped-VMEM limit set below (and under v5e's
# 16 MiB default, kept explicit for headroom).
_TB_MAX = 2048
# At or below this batch size, a single grid step is cheapest (grid is a
# sequential loop; splitting only pays once both v7x TensorCores can be fed).
_SMALL_B = 256


@functools.partial(jax.jit, static_argnames=("input_dim", "num_z_layers"))
def fc_model_forward(x, params, *, input_dim, num_z_layers):
    # Glue: flatten exactly like x.view(-1, input_dim). Reshape is metadata-only.
    x_flat = jnp.reshape(x, (-1, input_dim)).astype(jnp.float32)
    B = x_flat.shape[0]

    z_wide_dim = params["b_in"].shape[0]
    z_narrow_dim = params["z_layers"][0][0].shape[0] if num_z_layers else 0
    output_dim = params["b_out"].shape[0]

    # Lane-dense (multiple-of-128) padded feature dims. Zero padding in the
    # weights/biases keeps padded lanes exactly zero through every layer.
    K_in = _round_up(input_dim, 128)
    D_wide = _round_up(z_wide_dim, 128)
    D_narrow = _round_up(max(z_narrow_dim, 1), 128)
    D_out = _round_up(output_dim, 128)

    # Batch tiling:
    #  * B <= 256: one grid step, tile rounded to 16 rows (bf16 sublane packing).
    #  * B  > 256: even step count (>= 2) so the "parallel" grid axis shards
    #    evenly across both v7x TensorCores; tiles are multiples of 256 rows and
    #    capped at _TB_MAX.
    if B <= _SMALL_B:
        tb = _round_up(max(B, 16), 16)
        steps = 1
    else:
        pairs = max(1, _cdiv(B, 2 * _TB_MAX))
        steps = 2 * pairs
        tb = _round_up(_cdiv(B, steps), 256)
    B_pad = tb * steps
    grid = (steps,)

    # Assemble operands: x stays in f32 (cast to bf16 inside the kernel),
    # weights in bf16 (MXU-native), biases in f32. Weights are pre-transposed
    # so the kernel computes x @ W^T as x @ (W.T). Padding is a no-op when the
    # dims already line up.
    x_pad = _pad_to(x_flat, (B_pad, K_in))

    operands = [
        x_pad,
        _pad_to(params["w_in"].T, (K_in, D_wide)).astype(jnp.bfloat16),
        _pad_to(params["b_in"][None, :], (1, D_wide)).astype(jnp.float32),
    ]
    for (w_a, w_b, b_b) in params["z_layers"]:
        operands += [
            _pad_to(w_a.T, (D_wide, D_narrow)).astype(jnp.bfloat16),
            _pad_to(w_b.T, (D_narrow, D_wide)).astype(jnp.bfloat16),
            _pad_to(b_b[None, :], (1, D_wide)).astype(jnp.float32),
        ]
    operands += [
        _pad_to(params["w_out"].T, (D_wide, D_out)).astype(jnp.bfloat16),
        _pad_to(params["b_out"][None, :], (1, D_out)).astype(jnp.float32),
    ]

    # BlockSpecs: x / out tiled along the (padded) batch axis; weights and
    # biases loaded whole with a constant index_map, so they are DMA'd once and
    # stay resident across grid steps (no re-DMA, ~0.2 MiB total).
    x_spec = pl.BlockSpec((tb, K_in), lambda i: (i, 0))
    weight_specs = [
        pl.BlockSpec(op.shape, lambda i: (0, 0)) for op in operands[1:]
    ]
    out_spec = pl.BlockSpec((tb, D_out), lambda i: (i, 0))

    kernel = _make_fc_kernel(num_z_layers)

    # Advisory cost estimate so XLA schedules neighbouring ops sensibly.
    flops = 2 * B_pad * (
        K_in * D_wide
        + num_z_layers * (D_wide * D_narrow + D_narrow * D_wide)
        + D_wide * D_out)
    weight_bytes = sum(int(op.size) * op.dtype.itemsize for op in operands[1:])
    bytes_accessed = B_pad * K_in * 4 + B_pad * D_out * 2 + weight_bytes
    cost = pl.CostEstimate(flops=flops, transcendentals=0,
                           bytes_accessed=bytes_accessed)

    out_pad = pl.pallas_call(
        kernel,
        # bf16 output: halves the dominant HBM stream (padded-lane writeback).
        out_shape=jax.ShapeDtypeStruct((B_pad, D_out), jnp.bfloat16),
        grid_spec=pltpu.PrefetchScalarGridSpec(
            num_scalar_prefetch=0,
            grid=grid,
            in_specs=[x_spec] + weight_specs,
            out_specs=out_spec,
        ),
        compiler_params=pltpu.CompilerParams(
            dimension_semantics=("parallel",),
            vmem_limit_bytes=32 * 1024 * 1024),
        cost_estimate=cost,
    )(*operands)

    # Strip batch and output-lane padding (no-op when nothing was padded).
    return out_pad[:B, :output_dim]


def fc_model_reference(x, params, *, input_dim):
    """Pure-JAX (f32) reference of the eval-mode forward pass."""
    x_flat = jnp.reshape(x, (-1, input_dim)).astype(jnp.float32)
    h = x_flat @ params["w_in"].T + params["b_in"]
    for (w_a, w_b, b_b) in params["z_layers"]:
        z = jnp.maximum(h @ w_a.T, 0.0)
        h = z @ w_b.T + b_b
    return h @ params["w_out"].T + params["b_out"]


if __name__ == "__main__":
    # Model hyperparameters (small, consistent with the module's constructor).
    input_dim = 128
    z_wide_dim = 128
    z_narrow_dim = 64
    output_dim = 32
    num_z_layers = 2
    # p_drop_in / p_drop_hidden / sigma_in / sigma_hidden are inactive at eval.

    key = jax.random.PRNGKey(0)
    k_param, k_x = jax.random.split(key)

    params = init_params(k_param, input_dim, z_wide_dim, z_narrow_dim,
                         output_dim, num_z_layers)

    # NCHW-style input: (B=2, C=4, H=16, W=16) -> view(-1, 128) gives 16 rows.
    x = jax.random.normal(k_x, (2, 4, 16, 16), dtype=jnp.float32)

    out = fc_model_forward(x, params, input_dim=input_dim,
                           num_z_layers=num_z_layers)
    out = jax.block_until_ready(out)

    ref = fc_model_reference(x, params, input_dim=input_dim)
    assert out.shape == (16, output_dim), out.shape
    # bf16 matmul inputs + bf16 output (f32 MXU accumulation) vs pure-f32
    # reference -> loosened tolerance per the performance review.
    assert jnp.allclose(out.astype(jnp.float32), ref, atol=5e-2, rtol=5e-2), \
        "mismatch vs reference"

    print("KERNEL_OK")
</pallas_src>

<mosaic_0001>
module attributes {stable_mosaic.version = 11 : i64} {
  func.func @kernel(%arg0: i32, %arg1: memref<16x128xf32, #tpu.memory_space<vmem>>, %arg2: memref<128x128xbf16, #tpu.memory_space<vmem>>, %arg3: memref<1x128xf32, #tpu.memory_space<vmem>>, %arg4: memref<128x128xbf16, #tpu.memory_space<vmem>>, %arg5: memref<128x128xbf16, #tpu.memory_space<vmem>>, %arg6: memref<1x128xf32, #tpu.memory_space<vmem>>, %arg7: memref<128x128xbf16, #tpu.memory_space<vmem>>, %arg8: memref<128x128xbf16, #tpu.memory_space<vmem>>, %arg9: memref<1x128xf32, #tpu.memory_space<vmem>>, %arg10: memref<128x128xbf16, #tpu.memory_space<vmem>>, %arg11: memref<1x128xf32, #tpu.memory_space<vmem>>, %arg12: memref<16x128xbf16, #tpu.memory_space<vmem>>) attributes {dimension_semantics = [#tpu.dimension_semantics<parallel>], iteration_bounds = array<i64: 1>, scalar_prefetch = 0 : i64, scratch_operands = 0 : i64, tpu.core_type = #tpu.core_type<tc>, window_params = [{transform_indices = @transform_0, window_bounds = array<i64: 16, 128>}, {pipeline_mode = #tpu.pipeline_mode<synchronous>, transform_indices = @transform_1, window_bounds = array<i64: 128, 128>}, {pipeline_mode = #tpu.pipeline_mode<synchronous>, transform_indices = @transform_2, window_bounds = array<i64: 1, 128>}, {pipeline_mode = #tpu.pipeline_mode<synchronous>, transform_indices = @transform_3, window_bounds = array<i64: 128, 128>}, {pipeline_mode = #tpu.pipeline_mode<synchronous>, transform_indices = @transform_4, window_bounds = array<i64: 128, 128>}, {pipeline_mode = #tpu.pipeline_mode<synchronous>, transform_indices = @transform_5, window_bounds = array<i64: 1, 128>}, {pipeline_mode = #tpu.pipeline_mode<synchronous>, transform_indices = @transform_6, window_bounds = array<i64: 128, 128>}, {pipeline_mode = #tpu.pipeline_mode<synchronous>, transform_indices = @transform_7, window_bounds = array<i64: 128, 128>}, {pipeline_mode = #tpu.pipeline_mode<synchronous>, transform_indices = @transform_8, window_bounds = array<i64: 1, 128>}, {pipeline_mode = #tpu.pipeline_mode<synchronous>, transform_indices = @transform_9, window_bounds = array<i64: 128, 128>}, {pipeline_mode = #tpu.pipeline_mode<synchronous>, transform_indices = @transform_10, window_bounds = array<i64: 1, 128>}, {transform_indices = @transform_11, window_bounds = array<i64: 16, 128>}]} {
    %c0 = arith.constant 0 : index
    %c0_0 = arith.constant 0 : index
    %0 = vector.load %arg1[%c0, %c0_0] : memref<16x128xf32, #tpu.memory_space<vmem>>, vector<16x128xf32>
    %1 = arith.truncf %0 : vector<16x128xf32> to vector<16x128xbf16>
    %c0_1 = arith.constant 0 : index
    %c0_2 = arith.constant 0 : index
    %2 = vector.load %arg2[%c0_1, %c0_2] : memref<128x128xbf16, #tpu.memory_space<vmem>>, vector<128x128xbf16>
    %cst = arith.constant dense<0.000000e+00> : vector<16x128xf32>
    %3 = tpu.matmul %1, %2, %cst {dimension_numbers = #tpu.dot_dimension_numbers<[1], [0], [0], [1], [0, 0, 1, 1], [], []>} : vector<16x128xbf16>, vector<128x128xbf16>, vector<16x128xf32> -> vector<16x128xf32>
    %c0_3 = arith.constant 0 : index
    %c0_4 = arith.constant 0 : index
    %4 = vector.load %arg3[%c0_3, %c0_4] : memref<1x128xf32, #tpu.memory_space<vmem>>, vector<1x128xf32>
    %5 = vector.broadcast %4 : vector<1x128xf32> to vector<16x128xf32>
    %6 = arith.addf %3, %5 : vector<16x128xf32>
    %7 = arith.truncf %6 : vector<16x128xf32> to vector<16x128xbf16>
    %c0_5 = arith.constant 0 : index
    %c0_6 = arith.constant 0 : index
    %8 = vector.load %arg4[%c0_5, %c0_6] : memref<128x128xbf16, #tpu.memory_space<vmem>>, vector<128x128xbf16>
    %cst_7 = arith.constant dense<0.000000e+00> : vector<16x128xf32>
    %9 = tpu.matmul %7, %8, %cst_7 {dimension_numbers = #tpu.dot_dimension_numbers<[1], [0], [0], [1], [0, 0, 1, 1], [], []>} : vector<16x128xbf16>, vector<128x128xbf16>, vector<16x128xf32> -> vector<16x128xf32>
    %cst_8 = arith.constant 0.000000e+00 : f32
    %10 = vector.broadcast %cst_8 : f32 to vector<16x128xf32>
    %11 = arith.maximumf %9, %10 : vector<16x128xf32>
    %12 = arith.truncf %11 : vector<16x128xf32> to vector<16x128xbf16>
    %c0_9 = arith.constant 0 : index
    %c0_10 = arith.constant 0 : index
    %13 = vector.load %arg5[%c0_9, %c0_10] : memref<128x128xbf16, #tpu.memory_space<vmem>>, vector<128x128xbf16>
    %cst_11 = arith.constant dense<0.000000e+00> : vector<16x128xf32>
    %14 = tpu.matmul %12, %13, %cst_11 {dimension_numbers = #tpu.dot_dimension_numbers<[1], [0], [0], [1], [0, 0, 1, 1], [], []>} : vector<16x128xbf16>, vector<128x128xbf16>, vector<16x128xf32> -> vector<16x128xf32>
    %c0_12 = arith.constant 0 : index
    %c0_13 = arith.constant 0 : index
    %15 = vector.load %arg6[%c0_12, %c0_13] : memref<1x128xf32, #tpu.memory_space<vmem>>, vector<1x128xf32>
    %16 = vector.broadcast %15 : vector<1x128xf32> to vector<16x128xf32>
    %17 = arith.addf %14, %16 : vector<16x128xf32>
    %18 = arith.truncf %17 : vector<16x128xf32> to vector<16x128xbf16>
    %c0_14 = arith.constant 0 : index
    %c0_15 = arith.constant 0 : index
    %19 = vector.load %arg7[%c0_14, %c0_15] : memref<128x128xbf16, #tpu.memory_space<vmem>>, vector<128x128xbf16>
    %cst_16 = arith.constant dense<0.000000e+00> : vector<16x128xf32>
    %20 = tpu.matmul %18, %19, %cst_16 {dimension_numbers = #tpu.dot_dimension_numbers<[1], [0], [0], [1], [0, 0, 1, 1], [], []>} : vector<16x128xbf16>, vector<128x128xbf16>, vector<16x128xf32> -> vector<16x128xf32>
    %cst_17 = arith.constant 0.000000e+00 : f32
    %21 = vector.broadcast %cst_17 : f32 to vector<16x128xf32>
    %22 = arith.maximumf %20, %21 : vector<16x128xf32>
    %23 = arith.truncf %22 : vector<16x128xf32> to vector<16x128xbf16>
    %c0_18 = arith.constant 0 : index
    %c0_19 = arith.constant 0 : index
    %24 = vector.load %arg8[%c0_18, %c0_19] : memref<128x128xbf16, #tpu.memory_space<vmem>>, vector<128x128xbf16>
    %cst_20 = arith.constant dense<0.000000e+00> : vector<16x128xf32>
    %25 = tpu.matmul %23, %24, %cst_20 {dimension_numbers = #tpu.dot_dimension_numbers<[1], [0], [0], [1], [0, 0, 1, 1], [], []>} : vector<16x128xbf16>, vector<128x128xbf16>, vector<16x128xf32> -> vector<16x128xf32>
    %c0_21 = arith.constant 0 : index
    %c0_22 = arith.constant 0 : index
    %26 = vector.load %arg9[%c0_21, %c0_22] : memref<1x128xf32, #tpu.memory_space<vmem>>, vector<1x128xf32>
    %27 = vector.broadcast %26 : vector<1x128xf32> to vector<16x128xf32>
    %28 = arith.addf %25, %27 : vector<16x128xf32>
    %29 = arith.truncf %28 : vector<16x128xf32> to vector<16x128xbf16>
    %c0_23 = arith.constant 0 : index
    %c0_24 = arith.constant 0 : index
    %30 = vector.load %arg10[%c0_23, %c0_24] : memref<128x128xbf16, #tpu.memory_space<vmem>>, vector<128x128xbf16>
    %cst_25 = arith.constant dense<0.000000e+00> : vector<16x128xf32>
    %31 = tpu.matmul %29, %30, %cst_25 {dimension_numbers = #tpu.dot_dimension_numbers<[1], [0], [0], [1], [0, 0, 1, 1], [], []>} : vector<16x128xbf16>, vector<128x128xbf16>, vector<16x128xf32> -> vector<16x128xf32>
    %c0_26 = arith.constant 0 : index
    %c0_27 = arith.constant 0 : index
    %32 = vector.load %arg11[%c0_26, %c0_27] : memref<1x128xf32, #tpu.memory_space<vmem>>, vector<1x128xf32>
    %33 = vector.broadcast %32 : vector<1x128xf32> to vector<16x128xf32>
    %34 = arith.addf %31, %33 : vector<16x128xf32>
    %35 = arith.truncf %34 : vector<16x128xf32> to vector<16x128xbf16>
    %c0_28 = arith.constant 0 : index
    %c0_29 = arith.constant 0 : index
    %36 = vector.load %arg12[%c0_28, %c0_29] : memref<16x128xbf16, #tpu.memory_space<vmem>>, vector<16x128xbf16>
    tpu.vector_store %arg12[%c0_28, %c0_29], %35 {strides = array<i32>} : memref<16x128xbf16, #tpu.memory_space<vmem>>, vector<16x128xbf16>,
    return
  }
  func.func @transform_0(%arg0: i32) -> (i32, i32) {
    %c0_i32 = arith.constant 0 : i32
    %c0_i32_0 = arith.constant 0 : i32
    return %arg0, %c0_i32 : i32, i32
  }
  func.func @transform_1(%arg0: i32) -> (i32, i32) {
    %c0_i32 = arith.constant 0 : i32
    %c0_i32_0 = arith.constant 0 : i32
    %c0_i32_1 = arith.constant 0 : i32
    return %c0_i32, %c0_i32_0 : i32, i32
  }
  func.func @transform_2(%arg0: i32) -> (i32, i32) {
    %c0_i32 = arith.constant 0 : i32
    %c0_i32_0 = arith.constant 0 : i32
    %c0_i32_1 = arith.constant 0 : i32
    return %c0_i32, %c0_i32_0 : i32, i32
  }
  func.func @transform_3(%arg0: i32) -> (i32, i32) {
    %c0_i32 = arith.constant 0 : i32
    %c0_i32_0 = arith.constant 0 : i32
    %c0_i32_1 = arith.constant 0 : i32
    return %c0_i32, %c0_i32_0 : i32, i32
  }
  func.func @transform_4(%arg0: i32) -> (i32, i32) {
    %c0_i32 = arith.constant 0 : i32
    %c0_i32_0 = arith.constant 0 : i32
    %c0_i32_1 = arith.constant 0 : i32
    return %c0_i32, %c0_i32_0 : i32, i32
  }
  func.func @transform_5(%arg0: i32) -> (i32, i32) {
    %c0_i32 = arith.constant 0 : i32
    %c0_i32_0 = arith.constant 0 : i32
    %c0_i32_1 = arith.constant 0 : i32
    return %c0_i32, %c0_i32_0 : i32, i32
  }
  func.func @transform_6(%arg0: i32) -> (i32, i32) {
    %c0_i32 = arith.constant 0 : i32
    %c0_i32_0 = arith.constant 0 : i32
    %c0_i32_1 = arith.constant 0 : i32
    return %c0_i32, %c0_i32_0 : i32, i32
  }
  func.func @transform_7(%arg0: i32) -> (i32, i32) {
    %c0_i32 = arith.constant 0 : i32
    %c0_i32_0 = arith.constant 0 : i32
    %c0_i32_1 = arith.constant 0 : i32
    return %c0_i32, %c0_i32_0 : i32, i32
  }
  func.func @transform_8(%arg0: i32) -> (i32, i32) {
    %c0_i32 = arith.constant 0 : i32
    %c0_i32_0 = arith.constant 0 : i32
    %c0_i32_1 = arith.constant 0 : i32
    return %c0_i32, %c0_i32_0 : i32, i32
  }
  func.func @transform_9(%arg0: i32) -> (i32, i32) {
    %c0_i32 = arith.constant 0 : i32
    %c0_i32_0 = arith.constant 0 : i32
    %c0_i32_1 = arith.constant 0 : i32
    return %c0_i32, %c0_i32_0 : i32, i32
  }
  func.func @transform_10(%arg0: i32) -> (i32, i32) {
    %c0_i32 = arith.constant 0 : i32
    %c0_i32_0 = arith.constant 0 : i32
    %c0_i32_1 = arith.constant 0 : i32
    return %c0_i32, %c0_i32_0 : i32, i32
  }
  func.func @transform_11(%arg0: i32) -> (i32, i32) {
    %c0_i32 = arith.constant 0 : i32
    %c0_i32_0 = arith.constant 0 : i32
    return %arg0, %c0_i32 : i32, i32
  }
}

</mosaic_0001>

<llo_original>
// kernel: fc_model_forward.1
$region0: #{fc_model_forward.1}
  #allocation0 [shape = 'u32[]', space=smem, size = 0x4, offset = 0x4, fixed_abs, tag = 'smem constant byte address 0x4 - core index']
  #allocation1 [shape = 'u32[144,128]{1,0:T(1,128)}', space=vmem, size = 0x12000, scoped, tag = 'internal scratch']
  %s0 = inlined_call_operand.vmem [shape: f32[16,128], index: 0, kind: input, shape index: {}]
  %s1 = inlined_call_operand.vmem [shape: bf16[128,128], index: 1, kind: input, shape index: {}]
  %s2 = inlined_call_operand.vmem [shape: f32[1,128], index: 2, kind: input, shape index: {}]
  %s3 = inlined_call_operand.vmem [shape: bf16[128,128], index: 3, kind: input, shape index: {}]
  %s4 = inlined_call_operand.vmem [shape: bf16[128,128], index: 4, kind: input, shape index: {}]
  %s5 = inlined_call_operand.vmem [shape: f32[1,128], index: 5, kind: input, shape index: {}]
  %s6 = inlined_call_operand.vmem [shape: bf16[128,128], index: 6, kind: input, shape index: {}]
  %s7 = inlined_call_operand.vmem [shape: bf16[128,128], index: 7, kind: input, shape index: {}]
  %s8 = inlined_call_operand.vmem [shape: f32[1,128], index: 8, kind: input, shape index: {}]
  %s9 = inlined_call_operand.vmem [shape: bf16[128,128], index: 9, kind: input, shape index: {}]
  %s10 = inlined_call_operand.vmem [shape: f32[1,128], index: 10, kind: input, shape index: {}]
  %s11 = inlined_call_operand.hbm [shape: bf16[16,128], index: 11, kind: output, shape index: {}]
  %s12 = sld [smem:[#allocation0]]
  $region54: #{fc_model_forward.1} parent=0
    _
  %s14 = ssub.s32 1, %s12
  %s15 = scalar_select 0, %s14, %s12
  $region1: #{fc_model_forward.1} parent=0
    #allocation2 [shape = 'u8[4096]{0}', space=vmem, size = 0x1000, scoped, tag = 'output window, operand 0, single buffered']
    #allocation3 [shape = 's32[1]{0}', space=sflag, size = 0x4, scoped, tag = 'scoped memory for fc_model_forward.1']
    %16 = vsyncpa [#allocation3], 0
    // Predicated region
    $region2: #{fc_model_forward.1} parent=1 // pred_check
      _
    $region3: #{fc_model_forward.1} parent=1 // pred_check_branch
      %18 = sbr.rel (0) target = $region5
    $region4: #{fc_model_forward.1} parent=1 // pred_region
      _
    $region5: #{fc_model_forward.1} parent=1 // pred_fallthru
      _
    // Predicated region
    $region6: #{fc_model_forward.1} parent=1 // pred_check
      _
    $region7: #{fc_model_forward.1} parent=1 // pred_check_branch
      %20 = sbr.rel (0) target = $region9
    $region8: #{fc_model_forward.1} parent=1 // pred_region
      _
    $region9: #{fc_model_forward.1} parent=1 // pred_fallthru
      _
    // Predicated region
    $region10: #{fc_model_forward.1} parent=1 // pred_check
      _
    $region11: #{fc_model_forward.1} parent=1 // pred_check_branch
      %22 = sbr.rel (0) target = $region13
    $region12: #{fc_model_forward.1} parent=1 // pred_region
      _
    $region13: #{fc_model_forward.1} parent=1 // pred_fallthru
      _
    // Predicated region
    $region14: #{fc_model_forward.1} parent=1 // pred_check
      _
    $region15: #{fc_model_forward.1} parent=1 // pred_check_branch
      %24 = sbr.rel (0) target = $region17
    $region16: #{fc_model_forward.1} parent=1 // pred_region
      _
    $region17: #{fc_model_forward.1} parent=1 // pred_fallthru
      _
    // Predicated region
    $region18: #{fc_model_forward.1} parent=1 // pred_check
      _
    $region19: #{fc_model_forward.1} parent=1 // pred_check_branch
      %26 = sbr.rel (0) target = $region21
    $region20: #{fc_model_forward.1} parent=1 // pred_region
      _
    $region21: #{fc_model_forward.1} parent=1 // pred_fallthru
      _
    // Predicated region
    $region22: #{fc_model_forward.1} parent=1 // pred_check
      _
    $region23: #{fc_model_forward.1} parent=1 // pred_check_branch
      %28 = sbr.rel (0) target = $region25
    $region24: #{fc_model_forward.1} parent=1 // pred_region
      _
    $region25: #{fc_model_forward.1} parent=1 // pred_fallthru
      _
    // Predicated region
    $region26: #{fc_model_forward.1} parent=1 // pred_check
      _
    $region27: #{fc_model_forward.1} parent=1 // pred_check_branch
      %30 = sbr.rel (0) target = $region29
    $region28: #{fc_model_forward.1} parent=1 // pred_region
      _
    $region29: #{fc_model_forward.1} parent=1 // pred_fallthru
      _
    // Predicated region
    $region30: #{fc_model_forward.1} parent=1 // pred_check
      _
    $region31: #{fc_model_forward.1} parent=1 // pred_check_branch
      %32 = sbr.rel (0) target = $region33
    $region32: #{fc_model_forward.1} parent=1 // pred_region
      _
    $region33: #{fc_model_forward.1} parent=1 // pred_fallthru
      _
    // Predicated region
    $region34: #{fc_model_forward.1} parent=1 // pred_check
      _
    $region35: #{fc_model_forward.1} parent=1 // pred_check_branch
      %34 = sbr.rel (0) target = $region37
    $region36: #{fc_model_forward.1} parent=1 // pred_region
      _
    $region37: #{fc_model_forward.1} parent=1 // pred_fallthru
      _
    // Predicated region
    $region38: #{fc_model_forward.1} parent=1 // pred_check
      _
    $region39: #{fc_model_forward.1} parent=1 // pred_check_branch
      %36 = sbr.rel (0) target = $region41
    $region40: #{fc_model_forward.1} parent=1 // pred_region
      _
    $region41: #{fc_model_forward.1} parent=1 // pred_fallthru
      _
    // Predicated region
    $region42: #{fc_model_forward.1} parent=1 // pred_check
      _
    $region43: #{fc_model_forward.1} parent=1 // pred_check_branch
      %38 = sbr.rel (0) target = $region45
    $region44: #{fc_model_forward.1} parent=1 // pred_region
      _
    $region45: #{fc_model_forward.1} parent=1 // pred_fallthru
      _
    %v40 = vld [vmem:[%s0] sm:$0xff]
    %v41 = vld [vmem:[%s0 + $0x8] sm:$0xff]
    %v42 = vpack.c.bf16 %v41, %v40
    %v43 = vld [vmem:[%s1] sm:$0xf]
    %v44 = vld [vmem:[%s1 + $0x4] sm:$0xf]
    %v45 = vld [vmem:[%s1 + $0x8] sm:$0xf]
    %v46 = vld [vmem:[%s1 + $0xc] sm:$0xf]
    %v47 = vld [vmem:[%s1 + $0x10] sm:$0xf]
    %v48 = vld [vmem:[%s1 + $0x14] sm:$0xf]
    %v49 = vld [vmem:[%s1 + $0x18] sm:$0xf]
    %v50 = vld [vmem:[%s1 + $0x1c] sm:$0xf]
    %v51 = vld [vmem:[%s1 + $0x20] sm:$0xf]
    %v52 = vld [vmem:[%s1 + $0x24] sm:$0xf]
    %v53 = vld [vmem:[%s1 + $0x28] sm:$0xf]
    %v54 = vld [vmem:[%s1 + $0x2c] sm:$0xf]
    %v55 = vld [vmem:[%s1 + $0x30] sm:$0xf]
    %v56 = vld [vmem:[%s1 + $0x34] sm:$0xf]
    %v57 = vld [vmem:[%s1 + $0x38] sm:$0xf]
    %v58 = vld [vmem:[%s1 + $0x3c] sm:$0xf]
    %v59 = vld [vmem:[%s2] sm:$0x1]
    %v61 = vlaneseq
    %v62 = vshrl.u32 %v61, 7
    %v63 = vsub.s32 0, %v62
    %v64 = vrot.slane %v59, %v63
    %v82 = vunpack.c.l.b16 %v43
    %v83 = vunpack.c.l.b16 %v44
    %v84 = vunpack.c.l.b16 %v45
    %v85 = vunpack.c.l.b16 %v46
    %v86 = vunpack.c.l.b16 %v47
    %v87 = vunpack.c.l.b16 %v48
    %v88 = vunpack.c.l.b16 %v49
    %v89 = vunpack.c.l.b16 %v50
    %v90 = vunpack.c.l.b16 %v51
    %v91 = vunpack.c.l.b16 %v52
    %v92 = vunpack.c.l.b16 %v53
    %v93 = vunpack.c.l.b16 %v54
    %v94 = vunpack.c.l.b16 %v55
    %v95 = vunpack.c.l.b16 %v56
    %v96 = vunpack.c.l.b16 %v57
    %v97 = vunpack.c.l.b16 %v58
    %v98 = vpack.c.b16 %v83, %v82
    %v99 = vpack.c.b16 %v85, %v84
    %v100 = vpack.c.b16 %v87, %v86
    %v101 = vpack.c.b16 %v89, %v88
    %v102 = vpack.c.b16 %v91, %v90
    %v103 = vpack.c.b16 %v93, %v92
    %v104 = vpack.c.b16 %v95, %v94
    %v105 = vpack.c.b16 %v97, %v96
    %114 = vmatprep.subr.bf16.mxu0 0
    %115 = vmatpush1.bf16.msra.mxu0 %v98
    %116 = vmatprep.subr.bf16.mxu0 0
    %117 = vmatpush1.bf16.msra.mxu0 %v99
    %118 = vmatprep.subr.bf16.mxu0 0
    %119 = vmatpush1.bf16.msra.mxu0 %v100
    %120 = vmatprep.subr.bf16.mxu0 0
    %121 = vmatpush1.bf16.msra.mxu0 %v101
    %122 = vmatprep.subr.bf16.mxu0 0
    %123 = vmatpush1.bf16.msra.mxu0 %v102
    %124 = vmatprep.subr.bf16.mxu0 0
    %125 = vmatpush1.bf16.msra.mxu0 %v103
    %126 = vmatprep.subr.bf16.mxu0 0
    %127 = vmatpush1.bf16.msra.mxu0 %v104
    %128 = vmatprep.subr.bf16.mxu0 0
    %129 = vmatpush1.bf16.msra.mxu0 %v105
    %130 = vmatprep.subr.bf16.mxu0 0
    %131 = vmatpush1.bf16.msra.mxu0 0
    %132 = vmatprep.subr.bf16.mxu0 0
    %133 = vmatpush1.bf16.msra.mxu0 0
    %134 = vmatprep.subr.bf16.mxu0 0
    %135 = vmatpush1.bf16.msra.mxu0 0
    %136 = vmatprep.subr.bf16.mxu0 0
    %137 = vmatpush1.bf16.msra.mxu0 0
    %138 = vmatprep.subr.bf16.mxu0 0
    %139 = vmatpush1.bf16.msra.mxu0 0
    %140 = vmatprep.subr.bf16.mxu0 0
    %141 = vmatpush1.bf16.msra.mxu0 0
    %142 = vmatprep.subr.bf16.mxu0 0
    %143 = vmatpush1.bf16.msra.mxu0 0
    %144 = vmatprep.subr.bf16.mxu0 0
    %145 = vmatpush1.bf16.msra.mxu0 0
    %146 = vmatprep.mubr.bf16.mxu0 0
    %147 = vmatmul.mubr.bf16.gmra.mrb[0].mxu0 %v42
    %v148 = vpop.f32.mrb[0].mxu0
    %v149 = vadd.f32 %v64, %v148
    %v150 = vpop.f32.mrb[0].mxu0
    %v151 = vpop.f32.mrb[0].mxu0
    %v152 = vadd.f32 %v64, %v151
    %v153 = vpop.f32.mrb[0].mxu0
    %154 = vdwg.mxu0
    %v155 = vpack.c.bf16 %v152, %v149
    %v156 = vld [vmem:[%s3] sm:$0xf]
    %v157 = vld [vmem:[%s3 + $0x4] sm:$0xf]
    %v158 = vld [vmem:[%s3 + $0x8] sm:$0xf]
    %v159 = vld [vmem:[%s3 + $0xc] sm:$0xf]
    %v160 = vld [vmem:[%s3 + $0x10] sm:$0xf]
    %v161 = vld [vmem:[%s3 + $0x14] sm:$0xf]
    %v162 = vld [vmem:[%s3 + $0x18] sm:$0xf]
    %v163 = vld [vmem:[%s3 + $0x1c] sm:$0xf]
    %v164 = vld [vmem:[%s3 + $0x20] sm:$0xf]
    %v165 = vld [vmem:[%s3 + $0x24] sm:$0xf]
    %v166 = vld [vmem:[%s3 + $0x28] sm:$0xf]
    %v167 = vld [vmem:[%s3 + $0x2c] sm:$0xf]
    %v168 = vld [vmem:[%s3 + $0x30] sm:$0xf]
    %v169 = vld [vmem:[%s3 + $0x34] sm:$0xf]
    %v170 = vld [vmem:[%s3 + $0x38] sm:$0xf]
    %v171 = vld [vmem:[%s3 + $0x3c] sm:$0xf]
    %v188 = vunpack.c.l.b16 %v156
    %v189 = vunpack.c.l.b16 %v157
    %v190 = vunpack.c.l.b16 %v158
    %v191 = vunpack.c.l.b16 %v159
    %v192 = vunpack.c.l.b16 %v160
    %v193 = vunpack.c.l.b16 %v161
    %v194 = vunpack.c.l.b16 %v162
    %v195 = vunpack.c.l.b16 %v163
    %v196 = vunpack.c.l.b16 %v164
    %v197 = vunpack.c.l.b16 %v165
    %v198 = vunpack.c.l.b16 %v166
    %v199 = vunpack.c.l.b16 %v167
    %v200 = vunpack.c.l.b16 %v168
    %v201 = vunpack.c.l.b16 %v169
    %v202 = vunpack.c.l.b16 %v170
    %v203 = vunpack.c.l.b16 %v171
    %v204 = vpack.c.b16 %v189, %v188
    %v205 = vpack.c.b16 %v191, %v190
    %v206 = vpack.c.b16 %v193, %v192
    %v207 = vpack.c.b16 %v195, %v194
    %v208 = vpack.c.b16 %v197, %v196
    %v209 = vpack.c.b16 %v199, %v198
    %v210 = vpack.c.b16 %v201, %v200
    %v211 = vpack.c.b16 %v203, %v202
    %220 = vmatprep.subr.bf16.mxu0 0
    %221 = vmatpush1.bf16.msra.mxu0 %v204
    %222 = vmatprep.subr.bf16.mxu0 0
    %223 = vmatpush1.bf16.msra.mxu0 %v205
    %224 = vmatprep.subr.bf16.mxu0 0
    %225 = vmatpush1.bf16.msra.mxu0 %v206
    %226 = vmatprep.subr.bf16.mxu0 0
    %227 = vmatpush1.bf16.msra.mxu0 %v207
    %228 = vmatprep.subr.bf16.mxu0 0
    %229 = vmatpush1.bf16.msra.mxu0 %v208
    %230 = vmatprep.subr.bf16.mxu0 0
    %231 = vmatpush1.bf16.msra.mxu0 %v209
    %232 = vmatprep.subr.bf16.mxu0 0
    %233 = vmatpush1.bf16.msra.mxu0 %v210
    %234 = vmatprep.subr.bf16.mxu0 0
    %235 = vmatpush1.bf16.msra.mxu0 %v211
    %236 = vmatprep.subr.bf16.mxu0 0
    %237 = vmatpush1.bf16.msra.mxu0 0
    %238 = vmatprep.subr.bf16.mxu0 0
    %239 = vmatpush1.bf16.msra.mxu0 0
    %240 = vmatprep.subr.bf16.mxu0 0
    %241 = vmatpush1.bf16.msra.mxu0 0
    %242 = vmatprep.subr.bf16.mxu0 0
    %243 = vmatpush1.bf16.msra.mxu0 0
    %244 = vmatprep.subr.bf16.mxu0 0
    %245 = vmatpush1.bf16.msra.mxu0 0
    %246 = vmatprep.subr.bf16.mxu0 0
    %247 = vmatpush1.bf16.msra.mxu0 0
    %248 = vmatprep.subr.bf16.mxu0 0
    %249 = vmatpush1.bf16.msra.mxu0 0
    %250 = vmatprep.subr.bf16.mxu0 0
    %251 = vmatpush1.bf16.msra.mxu0 0
    %252 = vmatprep.mubr.bf16.mxu0 0
    %253 = vmatmul.mubr.bf16.gmra.mrb[0].mxu0 %v155
    %v254 = vpop.f32.mrb[0].mxu0
    %v255 = vadd.f32 0.0, %v254
    %v256 = vpop.f32.mrb[0].mxu0
    %v257 = vpop.f32.mrb[0].mxu0
    %v258 = vadd.f32 0.0, %v257
    %v259 = vpop.f32.mrb[0].mxu0
    %260 = vdwg.mxu0
    %v261 = vmax.f32 %v255, 0.0
    %v262 = vmax.f32 %v258, 0.0
    %v263 = vpack.c.bf16 %v262, %v261
    %v264 = vld [vmem:[%s4] sm:$0xf]
    %v265 = vld [vmem:[%s4 + $0x4] sm:$0xf]
    %v266 = vld [vmem:[%s4 + $0x8] sm:$0xf]
    %v267 = vld [vmem:[%s4 + $0xc] sm:$0xf]
    %v268 = vld [vmem:[%s4 + $0x10] sm:$0xf]
    %v269 = vld [vmem:[%s4 + $0x14] sm:$0xf]
    %v270 = vld [vmem:[%s4 + $0x18] sm:$0xf]
    %v271 = vld [vmem:[%s4 + $0x1c] sm:$0xf]
    %v272 = vld [vmem:[%s4 + $0x20] sm:$0xf]
    %v273 = vld [vmem:[%s4 + $0x24] sm:$0xf]
    %v274 = vld [vmem:[%s4 + $0x28] sm:$0xf]
    %v275 = vld [vmem:[%s4 + $0x2c] sm:$0xf]
    %v276 = vld [vmem:[%s4 + $0x30] sm:$0xf]
    %v277 = vld [vmem:[%s4 + $0x34] sm:$0xf]
    %v278 = vld [vmem:[%s4 + $0x38] sm:$0xf]
    %v279 = vld [vmem:[%s4 + $0x3c] sm:$0xf]
    %v280 = vld [vmem:[%s5] sm:$0x1]
    %v282 = vlaneseq
    %v283 = vshrl.u32 %v282, 7
    %v284 = vsub.s32 0, %v283
    %v285 = vrot.slane %v280, %v284
    %v303 = vunpack.c.l.b16 %v264
    %v304 = vunpack.c.l.b16 %v265
    %v305 = vunpack.c.l.b16 %v266
    %v306 = vunpack.c.l.b16 %v267
    %v307 = vunpack.c.l.b16 %v268
    %v308 = vunpack.c.l.b16 %v269
    %v309 = vunpack.c.l.b16 %v270
    %v310 = vunpack.c.l.b16 %v271
    %v311 = vunpack.c.l.b16 %v272
    %v312 = vunpack.c.l.b16 %v273
    %v313 = vunpack.c.l.b16 %v274
    %v314 = vunpack.c.l.b16 %v275
    %v315 = vunpack.c.l.b16 %v276
    %v316 = vunpack.c.l.b16 %v277
    %v317 = vunpack.c.l.b16 %v278
    %v318 = vunpack.c.l.b16 %v279
    %v319 = vpack.c.b16 %v304, %v303
    %v320 = vpack.c.b16 %v306, %v305
    %v321 = vpack.c.b16 %v308, %v307
    %v322 = vpack.c.b16 %v310, %v309
    %v323 = vpack.c.b16 %v312, %v311
    %v324 = vpack.c.b16 %v314, %v313
    %v325 = vpack.c.b16 %v316, %v315
    %v326 = vpack.c.b16 %v318, %v317
    %335 = vmatprep.subr.bf16.mxu0 0
    %336 = vmatpush1.bf16.msra.mxu0 %v319
    %337 = vmatprep.subr.bf16.mxu0 0
    %338 = vmatpush1.bf16.msra.mxu0 %v320
    %339 = vmatprep.subr.bf16.mxu0 0
    %340 = vmatpush1.bf16.msra.mxu0 %v321
    %341 = vmatprep.subr.bf16.mxu0 0
    %342 = vmatpush1.bf16.msra.mxu0 %v322
    %343 = vmatprep.subr.bf16.mxu0 0
    %344 = vmatpush1.bf16.msra.mxu0 %v323
    %345 = vmatprep.subr.bf16.mxu0 0
    %346 = vmatpush1.bf16.msra.mxu0 %v324
    %347 = vmatprep.subr.bf16.mxu0 0
    %348 = vmatpush1.bf16.msra.mxu0 %v325
    %349 = vmatprep.subr.bf16.mxu0 0
    %350 = vmatpush1.bf16.msra.mxu0 %v326
    %351 = vmatprep.subr.bf16.mxu0 0
    %352 = vmatpush1.bf16.msra.mxu0 0
    %353 = vmatprep.subr.bf16.mxu0 0
    %354 = vmatpush1.bf16.msra.mxu0 0
    %355 = vmatprep.subr.bf16.mxu0 0
    %356 = vmatpush1.bf16.msra.mxu0 0
    %357 = vmatprep.subr.bf16.mxu0 0
    %358 = vmatpush1.bf16.msra.mxu0 0
    %359 = vmatprep.subr.bf16.mxu0 0
    %360 = vmatpush1.bf16.msra.mxu0 0
    %361 = vmatprep.subr.bf16.mxu0 0
    %362 = vmatpush1.bf16.msra.mxu0 0
    %363 = vmatprep.subr.bf16.mxu0 0
    %364 = vmatpush1.bf16.msra.mxu0 0
    %365 = vmatprep.subr.bf16.mxu0 0
    %366 = vmatpush1.bf16.msra.mxu0 0
    %367 = vmatprep.mubr.bf16.mxu0 0
    %368 = vmatmul.mubr.bf16.gmra.mrb[0].mxu0 %v263
    %v369 = vpop.f32.mrb[0].mxu0
    %v370 = vadd.f32 %v285, %v369
    %v371 = vpop.f32.mrb[0].mxu0
    %v372 = vpop.f32.mrb[0].mxu0
    %v373 = vadd.f32 %v285, %v372
    %v374 = vpop.f32.mrb[0].mxu0
    %375 = vdwg.mxu0
    %v376 = vpack.c.bf16 %v373, %v370
    %v377 = vld [vmem:[%s6] sm:$0xf]
    %v378 = vld [vmem:[%s6 + $0x4] sm:$0xf]
    %v379 = vld [vmem:[%s6 + $0x8] sm:$0xf]
    %v380 = vld [vmem:[%s6 + $0xc] sm:$0xf]
    %v381 = vld [vmem:[%s6 + $0x10] sm:$0xf]
    %v382 = vld [vmem:[%s6 + $0x14] sm:$0xf]
    %v383 = vld [vmem:[%s6 + $0x18] sm:$0xf]
    %v384 = vld [vmem:[%s6 + $0x1c] sm:$0xf]
    %v385 = vld [vmem:[%s6 + $0x20] sm:$0xf]
    %v386 = vld [vmem:[%s6 + $0x24] sm:$0xf]
    %v387 = vld [vmem:[%s6 + $0x28] sm:$0xf]
    %v388 = vld [vmem:[%s6 + $0x2c] sm:$0xf]
    %v389 = vld [vmem:[%s6 + $0x30] sm:$0xf]
    %v390 = vld [vmem:[%s6 + $0x34] sm:$0xf]
    %v391 = vld [vmem:[%s6 + $0x38] sm:$0xf]
    %v392 = vld [vmem:[%s6 + $0x3c] sm:$0xf]
    %v409 = vunpack.c.l.b16 %v377
    %v410 = vunpack.c.l.b16 %v378
    %v411 = vunpack.c.l.b16 %v379
    %v412 = vunpack.c.l.b16 %v380
    %v413 = vunpack.c.l.b16 %v381
    %v414 = vunpack.c.l.b16 %v382
    %v415 = vunpack.c.l.b16 %v383
    %v416 = vunpack.c.l.b16 %v384
    %v417 = vunpack.c.l.b16 %v385
    %v418 = vunpack.c.l.b16 %v386
    %v419 = vunpack.c.l.b16 %v387
    %v420 = vunpack.c.l.b16 %v388
    %v421 = vunpack.c.l.b16 %v389
    %v422 = vunpack.c.l.b16 %v390
    %v423 = vunpack.c.l.b16 %v391
    %v424 = vunpack.c.l.b16 %v392
    %v425 = vpack.c.b16 %v410, %v409
    %v426 = vpack.c.b16 %v412, %v411
    %v427 = vpack.c.b16 %v414, %v413
    %v428 = vpack.c.b16 %v416, %v415
    %v429 = vpack.c.b16 %v418, %v417
    %v430 = vpack.c.b16 %v420, %v419
    %v431 = vpack.c.b16 %v422, %v421
    %v432 = vpack.c.b16 %v424, %v423
    %441 = vmatprep.subr.bf16.mxu0 0
    %442 = vmatpush1.bf16.msra.mxu0 %v425
    %443 = vmatprep.subr.bf16.mxu0 0
    %444 = vmatpush1.bf16.msra.mxu0 %v426
    %445 = vmatprep.subr.bf16.mxu0 0
    %446 = vmatpush1.bf16.msra.mxu0 %v427
    %447 = vmatprep.subr.bf16.mxu0 0
    %448 = vmatpush1.bf16.msra.mxu0 %v428
    %449 = vmatprep.subr.bf16.mxu0 0
    %450 = vmatpush1.bf16.msra.mxu0 %v429
    %451 = vmatprep.subr.bf16.mxu0 0
    %452 = vmatpush1.bf16.msra.mxu0 %v430
    %453 = vmatprep.subr.bf16.mxu0 0
    %454 = vmatpush1.bf16.msra.mxu0 %v431
    %455 = vmatprep.subr.bf16.mxu0 0
    %456 = vmatpush1.bf16.msra.mxu0 %v432
    %457 = vmatprep.subr.bf16.mxu0 0
    %458 = vmatpush1.bf16.msra.mxu0 0
    %459 = vmatprep.subr.bf16.mxu0 0
    %460 = vmatpush1.bf16.msra.mxu0 0
    %461 = vmatprep.subr.bf16.mxu0 0
    %462 = vmatpush1.bf16.msra.mxu0 0
    %463 = vmatprep.subr.bf16.mxu0 0
    %464 = vmatpush1.bf16.msra.mxu0 0
    %465 = vmatprep.subr.bf16.mxu0 0
    %466 = vmatpush1.bf16.msra.mxu0 0
    %467 = vmatprep.subr.bf16.mxu0 0
    %468 = vmatpush1.bf16.msra.mxu0 0
    %469 = vmatprep.subr.bf16.mxu0 0
    %470 = vmatpush1.bf16.msra.mxu0 0
    %471 = vmatprep.subr.bf16.mxu0 0
    %472 = vmatpush1.bf16.msra.mxu0 0
    %473 = vmatprep.mubr.bf16.mxu0 0
    %474 = vmatmul.mubr.bf16.gmra.mrb[0].mxu0 %v376
    %v475 = vpop.f32.mrb[0].mxu0
    %v476 = vadd.f32 0.0, %v475
    %v477 = vpop.f32.mrb[0].mxu0
    %v478 = vpop.f32.mrb[0].mxu0
    %v479 = vadd.f32 0.0, %v478
    %v480 = vpop.f32.mrb[0].mxu0
    %481 = vdwg.mxu0
    %v482 = vmax.f32 %v476, 0.0
    %v483 = vmax.f32 %v479, 0.0
    %v484 = vpack.c.bf16 %v483, %v482
    %v485 = vld [vmem:[%s7] sm:$0xf]
    %v486 = vld [vmem:[%s7 + $0x4] sm:$0xf]
    %v487 = vld [vmem:[%s7 + $0x8] sm:$0xf]
    %v488 = vld [vmem:[%s7 + $0xc] sm:$0xf]
    %v489 = vld [vmem:[%s7 + $0x10] sm:$0xf]
    %v490 = vld [vmem:[%s7 + $0x14] sm:$0xf]
    %v491 = vld [vmem:[%s7 + $0x18] sm:$0xf]
    %v492 = vld [vmem:[%s7 + $0x1c] sm:$0xf]
    %v493 = vld [vmem:[%s7 + $0x20] sm:$0xf]
    %v494 = vld [vmem:[%s7 + $0x24] sm:$0xf]
    %v495 = vld [vmem:[%s7 + $0x28] sm:$0xf]
    %v496 = vld [vmem:[%s7 + $0x2c] sm:$0xf]
    %v497 = vld [vmem:[%s7 + $0x30] sm:$0xf]
    %v498 = vld [vmem:[%s7 + $0x34] sm:$0xf]
    %v499 = vld [vmem:[%s7 + $0x38] sm:$0xf]
    %v500 = vld [vmem:[%s7 + $0x3c] sm:$0xf]
    %v501 = vld [vmem:[%s8] sm:$0x1]
    %v503 = vlaneseq
    %v504 = vshrl.u32 %v503, 7
    %v505 = vsub.s32 0, %v504
    %v506 = vrot.slane %v501, %v505
    %v524 = vunpack.c.l.b16 %v485
    %v525 = vunpack.c.l.b16 %v486
    %v526 = vunpack.c.l.b16 %v487
    %v527 = vunpack.c.l.b16 %v488
    %v528 = vunpack.c.l.b16 %v489
    %v529 = vunpack.c.l.b16 %v490
    %v530 = vunpack.c.l.b16 %v491
    %v531 = vunpack.c.l.b16 %v492
    %v532 = vunpack.c.l.b16 %v493
    %v533 = vunpack.c.l.b16 %v494
    %v534 = vunpack.c.l.b16 %v495
    %v535 = vunpack.c.l.b16 %v496
    %v536 = vunpack.c.l.b16 %v497
    %v537 = vunpack.c.l.b16 %v498
    %v538 = vunpack.c.l.b16 %v499
    %v539 = vunpack.c.l.b16 %v500
    %v540 = vpack.c.b16 %v525, %v524
    %v541 = vpack.c.b16 %v527, %v526
    %v542 = vpack.c.b16 %v529, %v528
    %v543 = vpack.c.b16 %v531, %v530
    %v544 = vpack.c.b16 %v533, %v532
    %v545 = vpack.c.b16 %v535, %v534
    %v546 = vpack.c.b16 %v537, %v536
    %v547 = vpack.c.b16 %v539, %v538
    %556 = vmatprep.subr.bf16.mxu0 0
    %557 = vmatpush1.bf16.msra.mxu0 %v540
    %558 = vmatprep.subr.bf16.mxu0 0
    %559 = vmatpush1.bf16.msra.mxu0 %v541
    %560 = vmatprep.subr.bf16.mxu0 0
    %561 = vmatpush1.bf16.msra.mxu0 %v542
    %562 = vmatprep.subr.bf16.mxu0 0
    %563 = vmatpush1.bf16.msra.mxu0 %v543
    %564 = vmatprep.subr.bf16.mxu0 0
    %565 = vmatpush1.bf16.msra.mxu0 %v544
    %566 = vmatprep.subr.bf16.mxu0 0
    %567 = vmatpush1.bf16.msra.mxu0 %v545
    %568 = vmatprep.subr.bf16.mxu0 0
    %569 = vmatpush1.bf16.msra.mxu0 %v546
    %570 = vmatprep.subr.bf16.mxu0 0
    %571 = vmatpush1.bf16.msra.mxu0 %v547
    %572 = vmatprep.subr.bf16.mxu0 0
    %573 = vmatpush1.bf16.msra.mxu0 0
    %574 = vmatprep.subr.bf16.mxu0 0
    %575 = vmatpush1.bf16.msra.mxu0 0
    %576 = vmatprep.subr.bf16.mxu0 0
    %577 = vmatpush1.bf16.msra.mxu0 0
    %578 = vmatprep.subr.bf16.mxu0 0
    %579 = vmatpush1.bf16.msra.mxu0 0
    %580 = vmatprep.subr.bf16.mxu0 0
    %581 = vmatpush1.bf16.msra.mxu0 0
    %582 = vmatprep.subr.bf16.mxu0 0
    %583 = vmatpush1.bf16.msra.mxu0 0
    %584 = vmatprep.subr.bf16.mxu0 0
    %585 = vmatpush1.bf16.msra.mxu0 0
    %586 = vmatprep.subr.bf16.mxu0 0
    %587 = vmatpush1.bf16.msra.mxu0 0
    %588 = vmatprep.mubr.bf16.mxu0 0
    %589 = vmatmul.mubr.bf16.gmra.mrb[0].mxu0 %v484
    %v590 = vpop.f32.mrb[0].mxu0
    %v591 = vadd.f32 %v506, %v590
    %v592 = vpop.f32.mrb[0].mxu0
    %v593 = vpop.f32.mrb[0].mxu0
    %v594 = vadd.f32 %v506, %v593
    %v595 = vpop.f32.mrb[0].mxu0
    %596 = vdwg.mxu0
    %v597 = vpack.c.bf16 %v594, %v591
    %v598 = vld [vmem:[%s9] sm:$0xf]
    %v599 = vld [vmem:[%s9 + $0x4] sm:$0xf]
    %v600 = vld [vmem:[%s9 + $0x8] sm:$0xf]
    %v601 = vld [vmem:[%s9 + $0xc] sm:$0xf]
    %v602 = vld [vmem:[%s9 + $0x10] sm:$0xf]
    %v603 = vld [vmem:[%s9 + $0x14] sm:$0xf]
    %v604 = vld [vmem:[%s9 + $0x18] sm:$0xf]
    %v605 = vld [vmem:[%s9 + $0x1c] sm:$0xf]
    %v606 = vld [vmem:[%s9 + $0x20] sm:$0xf]
    %v607 = vld [vmem:[%s9 + $0x24] sm:$0xf]
    %v608 = vld [vmem:[%s9 + $0x28] sm:$0xf]
    %v609 = vld [vmem:[%s9 + $0x2c] sm:$0xf]
    %v610 = vld [vmem:[%s9 + $0x30] sm:$0xf]
    %v611 = vld [vmem:[%s9 + $0x34] sm:$0xf]
    %v612 = vld [vmem:[%s9 + $0x38] sm:$0xf]
    %v613 = vld [vmem:[%s9 + $0x3c] sm:$0xf]
    %v614 = vld [vmem:[%s10] sm:$0x1]
    %v616 = vlaneseq
    %v617 = vshrl.u32 %v616, 7
    %v618 = vsub.s32 0, %v617
    %v619 = vrot.slane %v614, %v618
    %v637 = vunpack.c.l.b16 %v598
    %v638 = vunpack.c.l.b16 %v599
    %v639 = vunpack.c.l.b16 %v600
    %v640 = vunpack.c.l.b16 %v601
    %v641 = vunpack.c.l.b16 %v602
    %v642 = vunpack.c.l.b16 %v603
    %v643 = vunpack.c.l.b16 %v604
    %v644 = vunpack.c.l.b16 %v605
    %v645 = vunpack.c.l.b16 %v606
    %v646 = vunpack.c.l.b16 %v607
    %v647 = vunpack.c.l.b16 %v608
    %v648 = vunpack.c.l.b16 %v609
    %v649 = vunpack.c.l.b16 %v610
    %v650 = vunpack.c.l.b16 %v611
    %v651 = vunpack.c.l.b16 %v612
    %v652 = vunpack.c.l.b16 %v613
    %v653 = vpack.c.b16 %v638, %v637
    %v654 = vpack.c.b16 %v640, %v639
    %v655 = vpack.c.b16 %v642, %v641
    %v656 = vpack.c.b16 %v644, %v643
    %v657 = vpack.c.b16 %v646, %v645
    %v658 = vpack.c.b16 %v648, %v647
    %v659 = vpack.c.b16 %v650, %v649
    %v660 = vpack.c.b16 %v652, %v651
    %669 = vmatprep.subr.bf16.mxu0 0
    %670 = vmatpush1.bf16.msra.mxu0 %v653
    %671 = vmatprep.subr.bf16.mxu0 0
    %672 = vmatpush1.bf16.msra.mxu0 %v654
    %673 = vmatprep.subr.bf16.mxu0 0
    %674 = vmatpush1.bf16.msra.mxu0 %v655
    %675 = vmatprep.subr.bf16.mxu0 0
    %676 = vmatpush1.bf16.msra.mxu0 %v656
    %677 = vmatprep.subr.bf16.mxu0 0
    %678 = vmatpush1.bf16.msra.mxu0 %v657
    %679 = vmatprep.subr.bf16.mxu0 0
    %680 = vmatpush1.bf16.msra.mxu0 %v658
    %681 = vmatprep.subr.bf16.mxu0 0
    %682 = vmatpush1.bf16.msra.mxu0 %v659
    %683 = vmatprep.subr.bf16.mxu0 0
    %684 = vmatpush1.bf16.msra.mxu0 %v660
    %685 = vmatprep.subr.bf16.mxu0 0
    %686 = vmatpush1.bf16.msra.mxu0 0
    %687 = vmatprep.subr.bf16.mxu0 0
    %688 = vmatpush1.bf16.msra.mxu0 0
    %689 = vmatprep.subr.bf16.mxu0 0
    %690 = vmatpush1.bf16.msra.mxu0 0
    %691 = vmatprep.subr.bf16.mxu0 0
    %692 = vmatpush1.bf16.msra.mxu0 0
    %693 = vmatprep.subr.bf16.mxu0 0
    %694 = vmatpush1.bf16.msra.mxu0 0
    %695 = vmatprep.subr.bf16.mxu0 0
    %696 = vmatpush1.bf16.msra.mxu0 0
    %697 = vmatprep.subr.bf16.mxu0 0
    %698 = vmatpush1.bf16.msra.mxu0 0
    %699 = vmatprep.subr.bf16.mxu0 0
    %700 = vmatpush1.bf16.msra.mxu0 0
    %701 = vmatprep.mubr.bf16.mxu0 0
    %702 = vmatmul.mubr.bf16.gmra.mrb[0].mxu0 %v597
    %v703 = vpop.f32.mrb[0].mxu0
    %v704 = vadd.f32 %v619, %v703
    %v705 = vpop.f32.mrb[0].mxu0
    %v706 = vpop.f32.mrb[0].mxu0
    %v707 = vadd.f32 %v619, %v706
    %v708 = vpop.f32.mrb[0].mxu0
    %709 = vdwg.mxu0
    %v710 = vpack.c.bf16 %v707, %v704
    %v712 = vunpack.c.l.b16 %v710
    %v713 = vunpack.c.h.b16 %v710
    %v714 = vpack.c.b16 %v712, %v712
    %v715 = vpack.c.b16 %v713, %v713
    %718 = vst [vmem:[#allocation2] sm:$0xf] %v714
    %719 = vst [vmem:[#allocation2 + $0x4] sm:$0xf] %v715
    // Predicated region
    $region46: #{fc_model_forward.1} parent=1 // pred_check
      _
    $region47: #{fc_model_forward.1} parent=1 // pred_check_branch
      %721 = sbr.rel (0) target = $region49
    $region48: #{fc_model_forward.1} parent=1 // pred_region
      %s723 = ssub.s32 128, 128
      %724 = vsyncadd [#allocation3], %s723
      %s725 = sshll.u32 [#allocation2], 4
      %s726 = int_to_ptr.vmem [resolvable:$true] %s725
      %731 = dma.vmem_to_hbm [thread:$0]  %s726, 128, %s11, [#allocation3], 64, 64, 4
    $region49: #{fc_model_forward.1} parent=1 // pred_fallthru
      _
    // Predicated region
    $region50: #{fc_model_forward.1} parent=1 // pred_check
      _
    $region51: #{fc_model_forward.1} parent=1 // pred_check_branch
      %733 = sbr.rel (0) target = $region53
    $region52: #{fc_model_forward.1} parent=1 // pred_region
      %734 = dma.done [#allocation3], 128
    $region53: #{fc_model_forward.1} parent=1 // pred_fallthru
      _
    %735 = vsyncpa [#allocation3], 1

</llo_original>
